<compile_context>
chip_gen: v6e
topology: v6e:2x2x1
jax: 0.10.0
libtpu: 0.0.40
codegen_flags: <defaults>
</compile_context>

<pallas_src>
import math
import jax
import jax.numpy as jnp
from jax.experimental import pallas as pl
from jax.experimental.pallas import tpu as pltpu


def _hsm_matmul_kernel(x_ref, w_ref, bias_ref, out_ref, acc_ref):
    """One (tm, tn) output tile of  out = x @ W_comb + bias_comb  with K-axis accumulation."""
    k = pl.program_id(2)

    @pl.when(k == 0)
    def _():
        acc_ref[...] = jnp.zeros_like(acc_ref)

    acc_ref[...] += jnp.dot(x_ref[...], w_ref[...],
                            preferred_element_type=jnp.float32)

    @pl.when(k == pl.num_programs(2) - 1)
    def _():
        out_ref[...] = (acc_ref[...] + bias_ref[...]).astype(out_ref.dtype)


def _pick_tile(dim, preferred, align):
    """Largest multiple of `align` that divides `dim` and is <= `preferred`; else full dim."""
    if dim % align != 0:
        return dim
    t = min(preferred, dim)
    t -= t % align
    while t >= align:
        if dim % t == 0:
            return t
        t -= align
    return dim


def lstm_cell_forward(inputs, W1, b1, W2, b2, n_tokens_per_class, *, out_dtype=None):
    """inputs: (B, D); W1: (D, C); b1: (C,); W2: (P, D); b2: (C,) -> (B, C*P)."""
    inputs = jnp.asarray(inputs)
    W1 = jnp.asarray(W1)
    b1 = jnp.asarray(b1)
    W2 = jnp.asarray(W2)
    b2 = jnp.asarray(b2)

    B, D = inputs.shape
    C = W1.shape[1]
    P = int(n_tokens_per_class)
    N = C * P
    assert P <= C, "PyTorch module requires n_tokens_per_class <= n_classes (b2[labels % P])"

    if out_dtype is None:
        out_dtype = inputs.dtype  # pass out_dtype=jnp.bfloat16 to halve HBM write traffic

    # --- wrapper glue (plain JAX, one-time): fold HSM structure into a single GEMM ---
    # W_comb[:, c*P + j] = W1[:, c] + W2[j, :] ; bias_comb[c*P + j] = b1[c] + b2[j]
    W_comb = (jnp.repeat(W1, P, axis=1) + jnp.tile(W2.T, (1, C))).astype(inputs.dtype)   # (D, N)
    bias_comb = (jnp.repeat(b1, P) + jnp.tile(b2[:P], C)).astype(jnp.float32).reshape(1, N)

    # --- tile selection: lane-dense output, MXU-friendly, falls back to full dims ---
    tm = _pick_tile(B, 256, 8)      # batch (sublane) tile
    tn = _pick_tile(N, 2048, 128)   # output-column (lane) tile, multiple of 128/256
    tk = _pick_tile(D, 512, 128)    # contraction tile

    grid = (B // tm, N // tn, D // tk)

    in_bytes = jnp.dtype(inputs.dtype).itemsize
    out_bytes = jnp.dtype(out_dtype).itemsize
    tile_bytes = (tm * tk * in_bytes) + (tk * tn * in_bytes) + (tn * 4) + (tm * tn * out_bytes)
    vmem_limit = int(min(96 * 2**20,
                         max(8 * 2**20, 2 * (2 * tile_bytes + tm * tn * 4))))

    return pl.pallas_call(
        _hsm_matmul_kernel,
        out_shape=jax.ShapeDtypeStruct((B, N), out_dtype),
        grid_spec=pltpu.PrefetchScalarGridSpec(
            num_scalar_prefetch=0,
            grid=grid,
            in_specs=[
                pl.BlockSpec((tm, tk), lambda i, j, k: (i, k)),   # x tile
                pl.BlockSpec((tk, tn), lambda i, j, k: (k, j)),   # W_comb tile
                pl.BlockSpec((1, tn), lambda i, j, k: (0, j)),    # combined bias row
            ],
            out_specs=pl.BlockSpec((tm, tn), lambda i, j, k: (i, j)),
            scratch_shapes=[pltpu.VMEM((tm, tn), jnp.float32)],
        ),
        compiler_params=pltpu.CompilerParams(
            dimension_semantics=("parallel", "parallel", "arbitrary"),
            vmem_limit_bytes=vmem_limit,
        ),
    )(inputs, W_comb, bias_comb)


def _reference(inputs, W1, b1, W2, b2, P):
    """Pure-JAX replica of the PyTorch forward for validation."""
    C = W1.shape[1]
    labels = jnp.arange(C * P)
    label_W2 = labels % P
    label_b1 = inputs @ W1 + b1                      # (B, C)
    multi_bias = b2[label_W2][None, :]               # (1, C*P) broadcast over batch
    label_b2 = inputs @ W2[label_W2].T + multi_bias  # (B, C*P)
    label_b1 = jnp.repeat(label_b1, P, axis=1)       # (B, C*P)
    return label_b1 + label_b2


def _run_case(key, batch, hidden_size, n_tokens, n_tokens_per_class):
    n_classes = int(math.ceil(n_tokens / n_tokens_per_class))
    n_tokens_actual = n_classes * n_tokens_per_class

    k_x, k_w1, k_w2 = jax.random.split(key, 3)
    initrange = 0.1
    inputs = jax.random.normal(k_x, (batch, hidden_size), dtype=jnp.float32)
    W1 = jax.random.uniform(k_w1, (hidden_size, n_classes),
                            minval=-initrange, maxval=initrange, dtype=jnp.float32)
    b1 = jnp.zeros((n_classes,), dtype=jnp.float32)
    W2 = jax.random.uniform(k_w2, (n_tokens_per_class, hidden_size),
                            minval=-initrange, maxval=initrange, dtype=jnp.float32)
    b2 = jnp.zeros((n_classes,), dtype=jnp.float32)

    out = lstm_cell_forward(inputs, W1, b1, W2, b2, n_tokens_per_class)
    out = jax.block_until_ready(out)

    ref = _reference(inputs, W1, b1, W2, b2, n_tokens_per_class)
    assert out.shape == (batch, n_tokens_actual)
    assert jnp.allclose(out, ref, atol=1e-4, rtol=1e-4), "mismatch vs reference"


if __name__ == "__main__":
    key = jax.random.PRNGKey(0)
    k_small, k_big = jax.random.split(key)

    # Small shapes consistent with the module defaults.
    _run_case(k_small, batch=8, hidden_size=32, n_tokens=64, n_tokens_per_class=4)

    # Modest shapes that exercise the (batch, out-column) grid tiling + pipeline.
    _run_case(k_big, batch=512, hidden_size=128, n_tokens=4096, n_tokens_per_class=8)

    print("KERNEL_OK")
</pallas_src>

<mosaic_0001>
module attributes {stable_mosaic.version = 11 : i64} {
  func.func @_hsm_matmul_kernel(%arg0: i32, %arg1: i32, %arg2: i32, %arg3: memref<8x32xf32, #tpu.memory_space<vmem>>, %arg4: memref<32x64xf32, #tpu.memory_space<vmem>>, %arg5: memref<1x64xf32, #tpu.memory_space<vmem>>, %arg6: memref<8x64xf32, #tpu.memory_space<vmem>>, %arg7: memref<8x64xf32, #tpu.memory_space<vmem>>) attributes {dimension_semantics = [#tpu.dimension_semantics<parallel>, #tpu.dimension_semantics<parallel>, #tpu.dimension_semantics<arbitrary>], iteration_bounds = array<i64: 1, 1, 1>, scalar_prefetch = 0 : i64, scratch_operands = 1 : i64, tpu.core_type = #tpu.core_type<tc>, window_params = [{transform_indices = @transform_0, window_bounds = array<i64: 8, 32>}, {transform_indices = @transform_1, window_bounds = array<i64: 32, 64>}, {transform_indices = @transform_2, window_bounds = array<i64: 1, 64>}, {transform_indices = @transform_3, window_bounds = array<i64: 8, 64>}]} {
    %c0_i32 = arith.constant 0 : i32
    %0 = arith.cmpi eq, %arg2, %c0_i32 : i32
    %1 = arith.extui %0 : i1 to i32
    %c0_i32_0 = arith.constant 0 : i32
    %2 = arith.cmpi ne, %1, %c0_i32_0 : i32
    scf.if %2 {
      %cst_10 = arith.constant 0.000000e+00 : f32
      %12 = vector.broadcast %cst_10 : f32 to vector<8x64xf32>
      %c0_11 = arith.constant 0 : index
      %c0_12 = arith.constant 0 : index
      %13 = vector.load %arg7[%c0_11, %c0_12] : memref<8x64xf32, #tpu.memory_space<vmem>>, vector<8x64xf32>
      tpu.vector_store %arg7[%c0_11, %c0_12], %12 {strides = array<i32>} : memref<8x64xf32, #tpu.memory_space<vmem>>, vector<8x64xf32>,
    } else {
    }
    %c0 = arith.constant 0 : index
    %c0_1 = arith.constant 0 : index
    %3 = vector.load %arg7[%c0, %c0_1] : memref<8x64xf32, #tpu.memory_space<vmem>>, vector<8x64xf32>
    %c0_2 = arith.constant 0 : index
    %c0_3 = arith.constant 0 : index
    %4 = vector.load %arg3[%c0_2, %c0_3] : memref<8x32xf32, #tpu.memory_space<vmem>>, vector<8x32xf32>
    %c0_4 = arith.constant 0 : index
    %c0_5 = arith.constant 0 : index
    %5 = vector.load %arg4[%c0_4, %c0_5] : memref<32x64xf32, #tpu.memory_space<vmem>>, vector<32x64xf32>
    %cst = arith.constant dense<0.000000e+00> : vector<8x64xf32>
    %6 = tpu.matmul %4, %5, %cst {dimension_numbers = #tpu.dot_dimension_numbers<[1], [0], [0], [1], [0, 0, 1, 1], [], []>} : vector<8x32xf32>, vector<32x64xf32>, vector<8x64xf32> -> vector<8x64xf32>
    %7 = arith.addf %3, %6 : vector<8x64xf32>
    %c0_6 = arith.constant 0 : index
    %c0_7 = arith.constant 0 : index
    %8 = vector.load %arg7[%c0_6, %c0_7] : memref<8x64xf32, #tpu.memory_space<vmem>>, vector<8x64xf32>
    tpu.vector_store %arg7[%c0_6, %c0_7], %7 {strides = array<i32>} : memref<8x64xf32, #tpu.memory_space<vmem>>, vector<8x64xf32>,
    %c0_i32_8 = arith.constant 0 : i32
    %9 = arith.cmpi eq, %arg2, %c0_i32_8 : i32
    %10 = arith.extui %9 : i1 to i32
    %c0_i32_9 = arith.constant 0 : i32
    %11 = arith.cmpi ne, %10, %c0_i32_9 : i32
    scf.if %11 {
      %c0_10 = arith.constant 0 : index
      %c0_11 = arith.constant 0 : index
      %12 = vector.load %arg7[%c0_10, %c0_11] : memref<8x64xf32, #tpu.memory_space<vmem>>, vector<8x64xf32>
      %c0_12 = arith.constant 0 : index
      %c0_13 = arith.constant 0 : index
      %13 = vector.load %arg5[%c0_12, %c0_13] : memref<1x64xf32, #tpu.memory_space<vmem>>, vector<1x64xf32>
      %14 = vector.broadcast %13 : vector<1x64xf32> to vector<8x64xf32>
      %15 = arith.addf %12, %14 : vector<8x64xf32>
      %c0_14 = arith.constant 0 : index
      %c0_15 = arith.constant 0 : index
      %16 = vector.load %arg6[%c0_14, %c0_15] : memref<8x64xf32, #tpu.memory_space<vmem>>, vector<8x64xf32>
      tpu.vector_store %arg6[%c0_14, %c0_15], %15 {strides = array<i32>} : memref<8x64xf32, #tpu.memory_space<vmem>>, vector<8x64xf32>,
    } else {
    }
    return
  }
  func.func @transform_0(%arg0: i32, %arg1: i32, %arg2: i32) -> (i32, i32) {
    %c0_i32 = arith.constant 0 : i32
    return %arg0, %arg2 : i32, i32
  }
  func.func @transform_1(%arg0: i32, %arg1: i32, %arg2: i32) -> (i32, i32) {
    %c0_i32 = arith.constant 0 : i32
    return %arg2, %arg1 : i32, i32
  }
  func.func @transform_2(%arg0: i32, %arg1: i32, %arg2: i32) -> (i32, i32) {
    %c0_i32 = arith.constant 0 : i32
    %c0_i32_0 = arith.constant 0 : i32
    return %c0_i32, %arg1 : i32, i32
  }
  func.func @transform_3(%arg0: i32, %arg1: i32, %arg2: i32) -> (i32, i32) {
    %c0_i32 = arith.constant 0 : i32
    return %arg0, %arg1 : i32, i32
  }
}

</mosaic_0001>

<llo_original>
// kernel: tpu_custom_call.1
$region0: #{tpu_custom_call.1}
  #allocation0 [shape = 'u32[]', space=smem, size = 0x4, offset = 0x4, fixed_abs, tag = 'smem constant byte address 0x4 - core index']
  #allocation1 [shape = 'u32[144,128]{1,0:T(1,128)}', space=vmem, size = 0x12000, scoped, tag = 'internal scratch']
  #allocation2 [shape = 'f32[8,64]{1,0:T(8,128)}', space=vmem, size = 0x1000, scoped, tag = 'scratch operand']
  %s0 = inlined_call_operand.hbm [shape: f32[8,32], index: 0, kind: input, shape index: {}]
  %s1 = inlined_call_operand.hbm [shape: f32[32,64], index: 1, kind: input, shape index: {}]
  %s2 = inlined_call_operand.vmem [shape: f32[1,64], index: 2, kind: input, shape index: {}]
  %s3 = inlined_call_operand.hbm [shape: f32[8,64], index: 3, kind: output, shape index: {}]
  %s4 = sld [smem:[#allocation0]]
  $region38: #{tpu_custom_call.1} parent=0
    _
  %s6 = ssub.s32 1, %s4
  %s7 = scalar_select 0, %s6, %s4
  $region1: #{tpu_custom_call.1} parent=0
    #allocation3 [shape = 'u8[4096]{0}', space=vmem, size = 0x1000, scoped, tag = 'input window, operand 0, single buffered']
    #allocation4 [shape = 's32[1]{0}', space=sflag, size = 0x4, scoped, tag = 'scoped memory for tpu_custom_call.1']
    #allocation5 [shape = 's32[1]{0}', space=sflag, size = 0x4, scoped, tag = 'scoped memory for tpu_custom_call.1']
    #allocation6 [shape = 'u8[16384]{0}', space=vmem, size = 0x4000, scoped, tag = 'input window, operand 1, single buffered']
    #allocation7 [shape = 's32[1]{0}', space=sflag, size = 0x4, scoped, tag = 'scoped memory for tpu_custom_call.1']
    #allocation8 [shape = 'u8[4096]{0}', space=vmem, size = 0x1000, scoped, tag = 'output window, operand 0, single buffered']
    %8 = vsyncpa [#allocation4], 0
    %9 = vsyncpa [#allocation7], 0
    %10 = vsyncpa [#allocation5], 0
    // Predicated region
    $region2: #{tpu_custom_call.1} parent=1 // pred_check
      _
    $region3: #{tpu_custom_call.1} parent=1 // pred_check_branch
      %12 = sbr.rel (0) target = $region5
    $region4: #{tpu_custom_call.1} parent=1 // pred_region
      %s14 = ssub.s32 128, 128
      %15 = vsyncadd [#allocation4], %s14
      %s17 = sshll.u32 [#allocation3], 4
      %s18 = int_to_ptr.vmem [resolvable:$true] %s17
      %20 = dma.hbm_to_vmem [thread:$0]  %s0, 128, %s18, [#allocation4]
    $region5: #{tpu_custom_call.1} parent=1 // pred_fallthru
      _
    // Predicated region
    $region6: #{tpu_custom_call.1} parent=1 // pred_check
      _
    $region7: #{tpu_custom_call.1} parent=1 // pred_check_branch
      %22 = sbr.rel (0) target = $region9
    $region8: #{tpu_custom_call.1} parent=1 // pred_region
      %s24 = ssub.s32 512, 512
      %25 = vsyncadd [#allocation7], %s24
      %s26 = sshll.u32 [#allocation6], 4
      %s27 = int_to_ptr.vmem [resolvable:$true] %s26
      %32 = dma.hbm_to_vmem [thread:$0]  %s1, 512, %s27, [#allocation7], 128, 128, 8
    $region9: #{tpu_custom_call.1} parent=1 // pred_fallthru
      _
    // Predicated region
    $region10: #{tpu_custom_call.1} parent=1 // pred_check
      _
    $region11: #{tpu_custom_call.1} parent=1 // pred_check_branch
      %34 = sbr.rel (0) target = $region13
    $region12: #{tpu_custom_call.1} parent=1 // pred_region
      _
    $region13: #{tpu_custom_call.1} parent=1 // pred_fallthru
      _
    // Predicated region
    $region14: #{tpu_custom_call.1} parent=1 // pred_check
      _
    $region15: #{tpu_custom_call.1} parent=1 // pred_check_branch
      %36 = sbr.rel (0) target = $region17
    $region16: #{tpu_custom_call.1} parent=1 // pred_region
      %37 = dma.done [#allocation4], 128
    $region17: #{tpu_custom_call.1} parent=1 // pred_fallthru
      _
    // Predicated region
    $region18: #{tpu_custom_call.1} parent=1 // pred_check
      _
    $region19: #{tpu_custom_call.1} parent=1 // pred_check_branch
      %39 = sbr.rel (0) target = $region21
    $region20: #{tpu_custom_call.1} parent=1 // pred_region
      %40 = dma.done [#allocation7], 512
    $region21: #{tpu_custom_call.1} parent=1 // pred_fallthru
      _
    %p41 = scmp.eq.s32.totalorder 0, 0
    // Predicated region
    $region22: #{tpu_custom_call.1} parent=1 // pred_check
      %p42 = pneg %p41
    $region23: #{tpu_custom_call.1} parent=1 // pred_check_branch
      %44 = sbr.rel (%p42) target = $region25
    $region24: #{tpu_custom_call.1} parent=1 // pred_region
      %vm45 = vcmask 523264
      %46 = vst.msk [vmem:[#allocation2] sm:$0xff] %vm45, 0.0
    $region25: #{tpu_custom_call.1} parent=1 // pred_fallthru
      _
    %v47 = vld [vmem:[#allocation2] sm:$0xff]
    %v48 = vld [vmem:[#allocation3] sm:$0xff]
    %v49 = vld [vmem:[#allocation6] sm:$0xff]
    %v50 = vld [vmem:[#allocation6 + $0x8] sm:$0xff]
    %v51 = vld [vmem:[#allocation6 + $0x10] sm:$0xff]
    %v52 = vld [vmem:[#allocation6 + $0x18] sm:$0xff]
    %vm53 = vcmask 261120
    %v55 = vsel %vm53, %v48, 0
    %57 = vmatprep.subr.mxu0 0.0
    %58 = vmatpush1.msra.mxu0 0.0
    %59 = vmatprep.subr.mxu0 0.0
    %60 = vmatpush1.msra.mxu0 0.0
    %61 = vmatprep.subr.mxu0 0.0
    %62 = vmatpush1.msra.mxu0 0.0
    %63 = vmatprep.subr.mxu0 0.0
    %64 = vmatpush1.msra.mxu0 0.0
    %65 = vmatprep.subr.mxu0 0.0
    %66 = vmatpush1.msra.mxu0 0.0
    %67 = vmatprep.subr.mxu0 0.0
    %68 = vmatpush1.msra.mxu0 0.0
    %69 = vmatprep.subr.mxu0 0.0
    %70 = vmatpush1.msra.mxu0 0.0
    %71 = vmatprep.subr.mxu0 0.0
    %72 = vmatpush1.msra.mxu0 0.0
    %73 = vmatprep.subr.mxu0 0.0
    %74 = vmatpush1.msra.mxu0 0.0
    %75 = vmatprep.subr.mxu0 0.0
    %76 = vmatpush1.msra.mxu0 0.0
    %77 = vmatprep.subr.mxu0 0.0
    %78 = vmatpush1.msra.mxu0 0.0
    %79 = vmatprep.subr.mxu0 0.0
    %80 = vmatpush1.msra.mxu0 0.0
    %81 = vmatprep.subr.mxu0 0.0
    %82 = vmatpush1.msra.mxu0 %v52
    %83 = vmatprep.subr.mxu0 0.0
    %84 = vmatpush1.msra.mxu0 %v51
    %85 = vmatprep.subr.mxu0 0.0
    %86 = vmatpush1.msra.mxu0 %v50
    %87 = vmatprep.subr.mxu0 0.0
    %88 = vmatpush1.msra.mxu0 %v49
    %89 = vmatprep.subr.mxu0 0.0
    %90 = vmatpush2.msra.mxu0 0.0
    %91 = vmatprep.subr.mxu0 0.0
    %92 = vmatpush2.msra.mxu0 0.0
    %93 = vmatprep.subr.mxu0 0.0
    %94 = vmatpush2.msra.mxu0 0.0
    %95 = vmatprep.subr.mxu0 0.0
    %96 = vmatpush2.msra.mxu0 0.0
    %97 = vmatprep.subr.mxu0 0.0
    %98 = vmatpush2.msra.mxu0 0.0
    %99 = vmatprep.subr.mxu0 0.0
    %100 = vmatpush2.msra.mxu0 0.0
    %101 = vmatprep.subr.mxu0 0.0
    %102 = vmatpush2.msra.mxu0 0.0
    %103 = vmatprep.subr.mxu0 0.0
    %104 = vmatpush2.msra.mxu0 0.0
    %105 = vmatprep.subr.mxu0 0.0
    %106 = vmatpush2.msra.mxu0 0.0
    %107 = vmatprep.subr.mxu0 0.0
    %108 = vmatpush2.msra.mxu0 0.0
    %109 = vmatprep.subr.mxu0 0.0
    %110 = vmatpush2.msra.mxu0 0.0
    %111 = vmatprep.subr.mxu0 0.0
    %112 = vmatpush2.msra.mxu0 0.0
    %113 = vmatprep.subr.mxu0 0.0
    %114 = vmatpush2.msra.mxu0 0.0
    %115 = vmatprep.subr.mxu0 0.0
    %116 = vmatpush2.msra.mxu0 0.0
    %117 = vmatprep.subr.mxu0 0.0
    %118 = vmatpush2.msra.mxu0 0.0
    %119 = vmatprep.subr.mxu0 0.0
    %120 = vmatpush2.msra.mxu0 0.0
    %121 = vmatprep.mubr.f32.mxu0 0.0
    %122 = vmatmul.mubr.f32.gmra.mxu0 %v55
    %v123 = vpop.f32.mrf.mxu0
    %v124 = vadd.f32 0.0, %v123
    %v125 = vpop.f32.mrf.mxu0
    %126 = vdwg.mxu0
    %v127 = vadd.f32 %v47, %v124
    %vm128 = vcmask 523264
    %129 = vst.msk [vmem:[#allocation2] sm:$0xff] %vm128, %v127
    // Predicated region
    $region26: #{tpu_custom_call.1} parent=1 // pred_check
      %p130 = pneg %p41
    $region27: #{tpu_custom_call.1} parent=1 // pred_check_branch
      %132 = sbr.rel (%p130) target = $region29
    $region28: #{tpu_custom_call.1} parent=1 // pred_region
      %v133 = vld [vmem:[#allocation2] sm:$0xff]
      %v134 = vld [vmem:[%s2] sm:$0x1]
      %v136 = vlaneseq
      %v137 = vshrl.u32 %v136, 7
      %v138 = vsub.s32 0, %v137
      %v139 = vrot.slane %v134, %v138
      %v141 = vadd.f32 %v133, %v139
      %142 = vst.msk [vmem:[#allocation8] sm:$0xff] %vm128, %v141
    $region29: #{tpu_custom_call.1} parent=1 // pred_fallthru
      _
    // Predicated region
    $region30: #{tpu_custom_call.1} parent=1 // pred_check
      _
    $region31: #{tpu_custom_call.1} parent=1 // pred_check_branch
      %144 = sbr.rel (0) target = $region33
    $region32: #{tpu_custom_call.1} parent=1 // pred_region
      %s146 = ssub.s32 128, 128
      %147 = vsyncadd [#allocation5], %s146
      %s149 = sshll.u32 [#allocation8], 4
      %s150 = int_to_ptr.vmem [resolvable:$true] %s149
      %152 = dma.vmem_to_hbm [thread:$0]  %s150, 128, %s3, [#allocation5]
    $region33: #{tpu_custom_call.1} parent=1 // pred_fallthru
      _
    // Predicated region
    $region34: #{tpu_custom_call.1} parent=1 // pred_check
      _
    $region35: #{tpu_custom_call.1} parent=1 // pred_check_branch
      %154 = sbr.rel (0) target = $region37
    $region36: #{tpu_custom_call.1} parent=1 // pred_region
      %155 = dma.done [#allocation5], 128
    $region37: #{tpu_custom_call.1} parent=1 // pred_fallthru
      _
    %156 = vsyncpa [#allocation4], 1
    %157 = vsyncpa [#allocation7], 1
    %158 = vsyncpa [#allocation5], 1

</llo_original>
